<compile_context>
chip_gen: v7x
topology: tpu7x:2x2x1
jax: 0.10.0
libtpu: 0.0.40
codegen_flags: <defaults>
</compile_context>

<pallas_src>
import jax
import jax.numpy as jnp
from jax.experimental import pallas as pl
from jax.experimental.pallas import tpu as pltpu

C_IN = 32
C_OUT = 64
K = 4
STRIDE = 2
BN_EPS = 1e-5
_KC = K * C_IN          # 128 == im2col contraction depth == MXU lane width
_MAX_TILE_L = 512       # output columns per grid step when tiling (multiple of 128)


def _conv_bn_relu_kernel(x_ref, w_ref, b_ref, o_ref):
    """One (n, l) grid step.

    x_ref: (1, P_pad, 2*C_in)  column-pairs for batch element n (whole sequence;
                               re-DMA'd only when n changes)
    w_ref: (C_out, 128)        im2col weight with BN scale pre-folded (resident)
    b_ref: (C_out, 1)          BN bias = beta - mean * scale        (resident)
    o_ref: (1, C_out, TILE_L)  output tile, PyTorch NCW layout (lane dim = L)
    """
    tile_l = o_ref.shape[2]
    l0 = pl.multiple_of(pl.program_id(1) * tile_l, tile_l)

    # im2col LHS: row t = [x[2t], x[2t+1], x[2t+2], x[2t+3]] = concat(pair[t], pair[t+1]).
    pa = x_ref[0, pl.ds(l0, tile_l), :]          # (TILE_L, 64)
    pb = x_ref[0, pl.ds(l0 + 1, tile_l), :]      # (TILE_L, 64)
    lhs = jnp.concatenate([pa, pb], axis=-1)     # (TILE_L, 128)

    # Single 128-deep MXU matmul, contracting both minor dims so the result comes out
    # already transposed as (C_out, TILE_L); f32 accumulation.
    acc = jax.lax.dot_general(
        w_ref[...], lhs,
        dimension_numbers=(((1,), (1,)), ((), ())),
        preferred_element_type=jnp.float32,
    )                                            # (C_out, TILE_L)

    y = jnp.maximum(acc + b_ref[...], 0.0)       # BN bias + ReLU (dropout = identity, eval)
    o_ref[0, :, :] = y.astype(o_ref.dtype)


def singlescale_cnn_module3(x_ncl, conv_w, bn_gamma, bn_beta, bn_mean, bn_var):
    """x_ncl: (N, C_in, L) float32 (PyTorch NCW). Returns (N, C_out, L_out) float32."""
    n, c_in, l = x_ncl.shape
    assert c_in == C_IN and l >= K
    l_out = (l - K) // STRIDE + 1

    # ---- tiling of the output length ----
    if l_out <= _MAX_TILE_L:
        tile_l = l_out
        num_l_tiles = 1
    else:
        tile_l = _MAX_TILE_L
        num_l_tiles = pl.cdiv(l_out, tile_l)
    l_out_pad = num_l_tiles * tile_l
    p_pad = l_out_pad + 1                        # pairs needed: t and t+1 per output col

    # ---- glue (one fused XLA copy): NCW -> column-pair layout (N, P, 2*C_in) ----
    x_nlc = jnp.transpose(x_ncl, (0, 2, 1)).astype(jnp.float32)
    x_pairs = x_nlc[:, : 2 * (l_out + 1), :].reshape(n, l_out + 1, 2 * C_IN)
    if p_pad > l_out + 1:
        x_pairs = jnp.pad(x_pairs, ((0, 0), (0, p_pad - (l_out + 1)), (0, 0)))

    # ---- fold BatchNorm (inference) into the conv weight + per-channel bias ----
    scale = (bn_gamma / jnp.sqrt(bn_var + BN_EPS)).astype(jnp.float32)          # (C_out,)
    bias = (bn_beta - bn_mean * scale).reshape(C_OUT, 1).astype(jnp.float32)    # (C_out, 1)
    # w_t[d, k*C_in + c] = conv_w[d, c, k] * scale[d]
    w_t = (jnp.transpose(conv_w, (0, 2, 1)).reshape(C_OUT, _KC)
           * scale[:, None]).astype(jnp.float32)                                # (C_out, 128)

    flops = 2 * n * l_out_pad * _KC * C_OUT
    bytes_accessed = 4 * (n * p_pad * 2 * C_IN + _KC * C_OUT + C_OUT
                          + n * C_OUT * l_out_pad)

    out = pl.pallas_call(
        _conv_bn_relu_kernel,
        out_shape=jax.ShapeDtypeStruct((n, C_OUT, l_out_pad), jnp.float32),
        grid=(n, num_l_tiles),
        in_specs=[
            pl.BlockSpec((1, p_pad, 2 * C_IN), lambda i, j: (i, 0, 0)),
            pl.BlockSpec((C_OUT, _KC), lambda i, j: (0, 0)),
            pl.BlockSpec((C_OUT, 1), lambda i, j: (0, 0)),
        ],
        out_specs=pl.BlockSpec((1, C_OUT, tile_l), lambda i, j: (i, 0, j)),
        compiler_params=pltpu.CompilerParams(
            dimension_semantics=("parallel", "parallel"),
            vmem_limit_bytes=32 * 1024 * 1024,
        ),
        cost_estimate=pl.CostEstimate(
            flops=flops, transcendentals=0, bytes_accessed=bytes_accessed),
    )(x_pairs, w_t, bias)

    if l_out_pad != l_out:
        out = out[:, :, :l_out]
    return out


def _reference(x_ncl, conv_w, bn_gamma, bn_beta, bn_mean, bn_var):
    """Pure-JAX reference of the same eval-mode forward."""
    y = jax.lax.conv_general_dilated(
        x_ncl, conv_w,
        window_strides=(STRIDE,),
        padding="VALID",
        dimension_numbers=("NCH", "OIH", "NCH"),
    )
    scale = bn_gamma / jnp.sqrt(bn_var + BN_EPS)
    bias = bn_beta - bn_mean * scale
    y = y * scale[None, :, None] + bias[None, :, None]
    return jnp.maximum(y, 0.0)


if __name__ == "__main__":
    key = jax.random.PRNGKey(0)
    k_x, k_w = jax.random.split(key)

    # Small shapes consistent with the module: N=2, C_in=32, L=16 -> L_out=7.
    N, L = 2, 16
    x = jax.random.normal(k_x, (N, C_IN, L), dtype=jnp.float32)

    # Deterministic parameter init (PyTorch-style uniform bound for Conv1d weight).
    fan_in = C_IN * K
    bound = 1.0 / (fan_in ** 0.5)
    conv_w = jax.random.uniform(
        k_w, (C_OUT, C_IN, K), minval=-bound, maxval=bound, dtype=jnp.float32
    )
    bn_gamma = jnp.ones((C_OUT,), jnp.float32)
    bn_beta = jnp.zeros((C_OUT,), jnp.float32)
    bn_mean = jnp.zeros((C_OUT,), jnp.float32)
    bn_var = jnp.ones((C_OUT,), jnp.float32)

    out = singlescale_cnn_module3(x, conv_w, bn_gamma, bn_beta, bn_mean, bn_var)
    out = jax.block_until_ready(out)

    ref = _reference(x, conv_w, bn_gamma, bn_beta, bn_mean, bn_var)
    assert out.shape == (N, C_OUT, (L - K) // STRIDE + 1), out.shape
    assert jnp.allclose(out, ref, atol=1e-4, rtol=1e-4), "mismatch vs reference"

    print("KERNEL_OK")
</pallas_src>

<mosaic_0001>
module attributes {stable_mosaic.version = 11 : i64} {
  func.func @_conv_bn_relu_kernel(%arg0: i32, %arg1: i32, %arg2: memref<1x8x64xf32, #tpu.memory_space<vmem>>, %arg3: memref<64x128xf32, #tpu.memory_space<vmem>>, %arg4: memref<64x1xf32, #tpu.memory_space<vmem>>, %arg5: memref<1x64x7xf32, #tpu.memory_space<vmem>>) attributes {dimension_semantics = [#tpu.dimension_semantics<parallel>, #tpu.dimension_semantics<parallel>], iteration_bounds = array<i64: 2, 1>, scalar_prefetch = 0 : i64, scratch_operands = 0 : i64, tpu.core_type = #tpu.core_type<tc>, window_params = [{transform_indices = @transform_0, window_bounds = array<i64: 1, 8, 64>}, {pipeline_mode = #tpu.pipeline_mode<synchronous>, transform_indices = @transform_1, window_bounds = array<i64: 64, 128>}, {pipeline_mode = #tpu.pipeline_mode<synchronous>, transform_indices = @transform_2, window_bounds = array<i64: 64, 1>}, {transform_indices = @transform_3, window_bounds = array<i64: 1, 64, 7>}]} {
    %c7_i32 = arith.constant 7 : i32
    %0 = arith.muli %arg1, %c7_i32 : i32
    %1 = tpu.assume_multiple %0, 7 : i32
    %c0 = arith.constant 0 : index
    %2 = arith.index_cast %1 : i32 to index
    %c0_0 = arith.constant 0 : index
    %3 = vector.load %arg2[%c0, %2, %c0_0] : memref<1x8x64xf32, #tpu.memory_space<vmem>>, vector<1x7x64xf32>
    %4 = vector.shape_cast %3 : vector<1x7x64xf32> to vector<7x64xf32>
    %c1_i32 = arith.constant 1 : i32
    %5 = arith.addi %1, %c1_i32 : i32
    %c0_1 = arith.constant 0 : index
    %6 = arith.index_cast %5 : i32 to index
    %c0_2 = arith.constant 0 : index
    %7 = vector.load %arg2[%c0_1, %6, %c0_2] : memref<1x8x64xf32, #tpu.memory_space<vmem>>, vector<1x7x64xf32>
    %8 = vector.shape_cast %7 : vector<1x7x64xf32> to vector<7x64xf32>
    %9 = tpu.concatenate %4, %8 in 1 : vector<7x64xf32>, vector<7x64xf32> -> vector<7x128xf32>
    %c0_3 = arith.constant 0 : index
    %c0_4 = arith.constant 0 : index
    %10 = vector.load %arg3[%c0_3, %c0_4] : memref<64x128xf32, #tpu.memory_space<vmem>>, vector<64x128xf32>
    %cst = arith.constant dense<0.000000e+00> : vector<64x7xf32>
    %11 = tpu.matmul %10, %9, %cst {dimension_numbers = #tpu.dot_dimension_numbers<[1], [1], [0], [0], [0, 0, 1, 0], [], []>} : vector<64x128xf32>, vector<7x128xf32>, vector<64x7xf32> -> vector<64x7xf32>
    %c0_5 = arith.constant 0 : index
    %c0_6 = arith.constant 0 : index
    %12 = vector.load %arg4[%c0_5, %c0_6] : memref<64x1xf32, #tpu.memory_space<vmem>>, vector<64x1xf32>
    %13 = vector.broadcast %12 : vector<64x1xf32> to vector<64x7xf32>
    %14 = arith.addf %11, %13 : vector<64x7xf32>
    %cst_7 = arith.constant 0.000000e+00 : f32
    %15 = vector.broadcast %cst_7 : f32 to vector<64x7xf32>
    %16 = arith.maximumf %14, %15 : vector<64x7xf32>
    %c0_8 = arith.constant 0 : index
    %c0_9 = arith.constant 0 : index
    %c0_10 = arith.constant 0 : index
    %17 = vector.load %arg5[%c0_8, %c0_9, %c0_10] : memref<1x64x7xf32, #tpu.memory_space<vmem>>, vector<1x64x7xf32>
    %18 = vector.shape_cast %17 : vector<1x64x7xf32> to vector<64x7xf32>
    %19 = vector.shape_cast %16 : vector<64x7xf32> to vector<1x64x7xf32>
    tpu.vector_store %arg5[%c0_8, %c0_9, %c0_10], %19 {strides = array<i32>} : memref<1x64x7xf32, #tpu.memory_space<vmem>>, vector<1x64x7xf32>,
    return
  }
  func.func @transform_0(%arg0: i32, %arg1: i32) -> (i32, i32, i32) {
    %c0_i32 = arith.constant 0 : i32
    %c0_i32_0 = arith.constant 0 : i32
    %c0_i32_1 = arith.constant 0 : i32
    return %arg0, %c0_i32, %c0_i32_0 : i32, i32, i32
  }
  func.func @transform_1(%arg0: i32, %arg1: i32) -> (i32, i32) {
    %c0_i32 = arith.constant 0 : i32
    %c0_i32_0 = arith.constant 0 : i32
    %c0_i32_1 = arith.constant 0 : i32
    return %c0_i32, %c0_i32_0 : i32, i32
  }
  func.func @transform_2(%arg0: i32, %arg1: i32) -> (i32, i32) {
    %c0_i32 = arith.constant 0 : i32
    %c0_i32_0 = arith.constant 0 : i32
    %c0_i32_1 = arith.constant 0 : i32
    return %c0_i32, %c0_i32_0 : i32, i32
  }
  func.func @transform_3(%arg0: i32, %arg1: i32) -> (i32, i32, i32) {
    %c0_i32 = arith.constant 0 : i32
    %c0_i32_0 = arith.constant 0 : i32
    return %arg0, %c0_i32, %arg1 : i32, i32, i32
  }
}

</mosaic_0001>

<llo_original>
// kernel: tpu_custom_call.1
$region0: #{tpu_custom_call.1}
  #allocation0 [shape = 'u32[]', space=smem, size = 0x4, offset = 0x4, fixed_abs, tag = 'smem constant byte address 0x4 - core index']
  #allocation1 [shape = 'u32[144,128]{1,0:T(1,128)}', space=vmem, size = 0x12000, scoped, tag = 'internal scratch']
  %s0 = inlined_call_operand.hbm [shape: f32[2,8,64], index: 0, kind: input, shape index: {}]
  %s1 = inlined_call_operand.vmem [shape: f32[64,128], index: 1, kind: input, shape index: {}]
  %s2 = inlined_call_operand.vmem [shape: f32[64,1], index: 2, kind: input, shape index: {}]
  %s3 = inlined_call_operand.vmem [shape: f32[2,64,7], index: 3, kind: output, shape index: {}]
  %s4 = sld [smem:[#allocation0]]
  $region49: #{tpu_custom_call.1} parent=0
    _
  %s6 = ssub.s32 1, %s4
  %s7 = scalar_select 0, %s6, %s4
  $region1: #{tpu_custom_call.1} parent=0
    #allocation2 [shape = 'u8[8192]{0}', space=vmem, size = 0x2000, scoped, tag = 'input window, operand 0']
    #allocation3 [shape = 's32[2]{0}', space=sflag, size = 0x8, scoped, tag = 'scoped memory for tpu_custom_call.1']
    %8 = vsyncpa [#allocation3], 0
    %s9 = scalar_lea.sflag [#allocation3], 1
    %10 = vsyncpa %s9, 0
    loop: start=0, step=1, limit=4
    $region2: #{tpu_custom_call.1} parent=1 // loop_pre_header
      _
    $region3: #{tpu_custom_call.1} parent=1 // loop_header
      %s12 = sphi 0, %s16
      %p13 = scmp.ge.s32.totalorder %s12, 4
      %s19 = sphi 0, %s31
      %s20 = sphi 0, %s27
      %s21 = sphi 0, %s19
      %s22 = sphi 0, %s20
      %s23 = sphi 0, %s21
      %s24 = sphi 0, %s22
      %s34 = sphi 0, %s36
      %s37 = sphi 0, %s34
      %s38 = sphi 0, %s37
      %s54 = sphi 0, %s38
      %s58 = sphi 0, %s58
      %s60 = sphi 0, %s58
      %s61 = sphi 0, %s60
      %s75 = sphi 0, %s61
      %s79 = sphi 0, %s79
      %s81 = sphi 0, %s79
      %s82 = sphi 0, %s81
      %s96 = sphi 0, %s82
      %s104 = sphi 0, %s106
      %s107 = sphi 0, %s104
      %s108 = sphi 0, %s107
      %s124 = sphi 0, %s108
    $region4: #{tpu_custom_call.1} parent=1 // loop_header_branch
      %15 = sbr.rel (%p13) target = $region8
    $region5: #{tpu_custom_call.1} parent=1 // loop_body
      %s17 = ssub.s32 %s12, 1
      %s18 = ssub.s32 %s12, 2
      %s25 = sadd.s32 1, %s20
      %p26 = scmp.ge.s32.totalorder %s25, 1
      %s27 = scalar_select %p26, 0, %s25
      %s28 = sadd.s32 1, %s19
      %s29 = scalar_select %p26, %s28, %s19
      %p30 = scmp.ge.s32.totalorder %s29, 2
      %s31 = scalar_select %p30, 0, %s29
      %s32 = ssub.s32 %s19, %s31
      %p33 = scmp.eq.s32.totalorder %s32, 0
      %s35 = sadd.s32 %s34, 1
      %s36 = scalar_select %p33, %s34, %s35
      %p39 = pneg %p33
      %p40 = scmp.eq.s32.totalorder %s12, 1
      %p41 = por %p39, %p40
      %p42 = scmp.ne.s32.totalorder %s34, %s37
      %p43 = scmp.eq.s32.totalorder %s12, 0
      %p44 = por %p42, %p43
      %p45 = scmp.ne.s32.totalorder %s34, %s37
      %p46 = scmp.eq.s32.totalorder %s17, 1
      %p47 = por %p45, %p46
      %p48 = scmp.ne.s32.totalorder %s37, %s38
      %p49 = scmp.eq.s32.totalorder %s17, 0
      %p50 = por %p48, %p49
      %p51 = scmp.ne.s32.totalorder %s37, %s38
      %p52 = scmp.eq.s32.totalorder %s18, 1
      %p53 = por %p51, %p52
      %p55 = scmp.ne.s32.totalorder %s38, %s54
      %p56 = scmp.eq.s32.totalorder %s18, 0
      %p57 = por %p55, %p56
      %s59 = sadd.s32 %s58, 1
      %p62 = scmp.eq.s32.totalorder %s12, 1
      %p63 = scmp.ne.s32.totalorder %s58, %s60
      %p64 = scmp.eq.s32.totalorder %s12, 0
      %p65 = por %p63, %p64
      %p66 = scmp.ne.s32.totalorder %s58, %s60
      %p67 = scmp.eq.s32.totalorder %s17, 1
      %p68 = por %p66, %p67
      %p69 = scmp.ne.s32.totalorder %s60, %s61
      %p70 = scmp.eq.s32.totalorder %s17, 0
      %p71 = por %p69, %p70
      %p72 = scmp.ne.s32.totalorder %s60, %s61
      %p73 = scmp.eq.s32.totalorder %s18, 1
      %p74 = por %p72, %p73
      %p76 = scmp.ne.s32.totalorder %s61, %s75
      %p77 = scmp.eq.s32.totalorder %s18, 0
      %p78 = por %p76, %p77
      %s80 = sadd.s32 %s79, 1
      %p83 = scmp.eq.s32.totalorder %s12, 1
      %p84 = scmp.ne.s32.totalorder %s79, %s81
      %p85 = scmp.eq.s32.totalorder %s12, 0
      %p86 = por %p84, %p85
      %p87 = scmp.ne.s32.totalorder %s79, %s81
      %p88 = scmp.eq.s32.totalorder %s17, 1
      %p89 = por %p87, %p88
      %p90 = scmp.ne.s32.totalorder %s81, %s82
      %p91 = scmp.eq.s32.totalorder %s17, 0
      %p92 = por %p90, %p91
      %p93 = scmp.ne.s32.totalorder %s81, %s82
      %p94 = scmp.eq.s32.totalorder %s18, 1
      %p95 = por %p93, %p94
      %p97 = scmp.ne.s32.totalorder %s82, %s96
      %p98 = scmp.eq.s32.totalorder %s18, 0
      %p99 = por %p97, %p98
      %s100 = ssub.s32 %s19, %s31
      %s101 = ssub.s32 %s20, %s27
      %s102 = sor.u32 %s100, %s101
      %p103 = scmp.eq.s32.totalorder %s102, 0
      %s105 = sadd.s32 %s104, 1
      %s106 = scalar_select %p103, %s104, %s105
      %p109 = pneg %p103
      %p110 = scmp.eq.s32.totalorder %s12, 1
      %p111 = por %p109, %p110
      %p112 = scmp.ne.s32.totalorder %s104, %s107
      %p113 = scmp.eq.s32.totalorder %s12, 0
      %p114 = por %p112, %p113
      %p115 = scmp.ne.s32.totalorder %s104, %s107
      %p116 = scmp.eq.s32.totalorder %s17, 1
      %p117 = por %p115, %p116
      %p118 = scmp.ne.s32.totalorder %s107, %s108
      %p119 = scmp.eq.s32.totalorder %s17, 0
      %p120 = por %p118, %p119
      %p121 = scmp.ne.s32.totalorder %s107, %s108
      %p122 = scmp.eq.s32.totalorder %s18, 1
      %p123 = por %p121, %p122
      %p125 = scmp.ne.s32.totalorder %s108, %s124
      %p126 = scmp.eq.s32.totalorder %s18, 0
      %p127 = por %p125, %p126
      %p128 = scmp.le.s32.totalorder 1, %s12
      %p129 = scmp.lt.s32.totalorder %s12, 3
      %p130 = pnand %p128, %p129
      %p131 = pneg %p130
      // Predicated region
      $region9: #{tpu_custom_call.1} parent=5 // pred_check
        _
      $region10: #{tpu_custom_call.1} parent=5 // pred_check_branch
        %133 = sbr.rel (%p130) target = $region12
      $region11: #{tpu_custom_call.1} parent=5 // pred_region
        %s134 = ssub.s32 %s12, 1
        // Predicated region
        $region13: #{tpu_custom_call.1} parent=11 // pred_check
          %p135 = pneg %p71
        $region14: #{tpu_custom_call.1} parent=11 // pred_check_branch
          %137 = sbr.rel (%p135) target = $region16
        $region15: #{tpu_custom_call.1} parent=11 // pred_region
          _
        $region16: #{tpu_custom_call.1} parent=11 // pred_fallthru
          _
        // Predicated region
        $region17: #{tpu_custom_call.1} parent=11 // pred_check
          %p138 = pneg %p92
        $region18: #{tpu_custom_call.1} parent=11 // pred_check_branch
          %140 = sbr.rel (%p138) target = $region20
        $region19: #{tpu_custom_call.1} parent=11 // pred_region
          _
        $region20: #{tpu_custom_call.1} parent=11 // pred_fallthru
          _
      $region12: #{tpu_custom_call.1} parent=5 // pred_fallthru
        _
      %p141 = scmp.lt.s32.totalorder %s12, 2
      // Predicated region
      $region21: #{tpu_custom_call.1} parent=5 // pred_check
        %p142 = pneg %p141
      $region22: #{tpu_custom_call.1} parent=5 // pred_check_branch
        %144 = sbr.rel (%p142) target = $region24
      $region23: #{tpu_custom_call.1} parent=5 // pred_region
        // Predicated region
        $region25: #{tpu_custom_call.1} parent=23 // pred_check
          %p145 = pneg %p44
        $region26: #{tpu_custom_call.1} parent=23 // pred_check_branch
          %147 = sbr.rel (%p145) target = $region28
        $region27: #{tpu_custom_call.1} parent=23 // pred_region
          %s148 = sand.u32 %s34, 1
          %s149 = scalar_lea.sflag [#allocation3], %s148
          %s150 = sand.u32 %s34, 1
          %s151 = smul.addr %s150, 8
          %s152 = scalar_lea.vmem [#allocation2], %s151
          %s154 = ssub.s32 128, 128
          %155 = vsyncadd %s149, %s154
          %s156 = smul.addr %s19, 128
          %s157 = scalar_lea.hbm %s0, %s156
          %s159 = sshll.u32 %s152, 4
          %s160 = int_to_ptr.vmem [resolvable:$true] %s159
          %162 = dma.hbm_to_vmem [thread:$0]  %s157, 128, %s160, %s149
        $region28: #{tpu_custom_call.1} parent=23 // pred_fallthru
          _
      $region24: #{tpu_custom_call.1} parent=5 // pred_fallthru
        _
      %p163 = scmp.le.s32.totalorder 1, %s12
      %p164 = scmp.lt.s32.totalorder %s12, 3
      %p165 = pnand %p163, %p164
      %p166 = pneg %p165
      // Predicated region
      $region29: #{tpu_custom_call.1} parent=5 // pred_check
        _
      $region30: #{tpu_custom_call.1} parent=5 // pred_check_branch
        %168 = sbr.rel (%p165) target = $region32
      $region31: #{tpu_custom_call.1} parent=5 // pred_region
        %s169 = ssub.s32 %s12, 1
        %s170 = sand.u32 %s37, 1
        %s171 = scalar_lea.sflag [#allocation3], %s170
        %s172 = sand.u32 %s37, 1
        %s173 = smul.addr %s172, 8
        %s174 = scalar_lea.vmem [#allocation2], %s173
        // Predicated region
        $region33: #{tpu_custom_call.1} parent=31 // pred_check
          %p175 = pneg %p50
        $region34: #{tpu_custom_call.1} parent=31 // pred_check_branch
          %177 = sbr.rel (%p175) target = $region36
        $region35: #{tpu_custom_call.1} parent=31 // pred_region
          %178 = dma.done %s171, 128
        $region36: #{tpu_custom_call.1} parent=31 // pred_fallthru
          _
        %s179 = sand.u32 %s37, 1
        %s180 = scalar_lea.sflag [#allocation3], %s179
        %s181 = sand.u32 %s37, 1
        %s182 = smul.addr %s181, 8
        %s183 = scalar_lea.vmem [#allocation2], %s182
        %p184 = pneg %p50
        %p185 = pneg %p47
        %p186 = pneg %p71
        %p187 = pneg %p68
        %p188 = pneg %p92
        %p189 = pneg %p89
        %p190 = pneg %p120
        %p191 = pneg %p117
        %p192 = scmp.lt.s32.totalorder %s21, 1
        %s193 = scalar_select %p192, %s21, 1
        %p194 = scmp.lt.s32.totalorder %s22, 0
        %s195 = scalar_select %p194, %s22, 0
        %s196 = smul.addr %s193, 8
        %s197 = sadd.s32 %s195, %s196
        %s198 = smul.addr %s197, 8
        %s199 = scalar_lea.vmem %s3, %s198
        %p200 = scmp.lt.s32.totalorder %s21, 1
        %s201 = scalar_select %p200, %s21, 1
        %p202 = scmp.lt.s32.totalorder %s22, 0
        %s203 = scalar_select %p202, %s22, 0
        %s204 = smul.addr %s201, 8
        %s205 = sadd.s32 %s203, %s204
        %s206 = smul.addr %s205, 8
        %s207 = scalar_lea.vmem %s3, %s206
        %s208 = smul.u32 %s22, 7
        %s209 = scalar_lea.vmem %s174, %s208 [#allocation2]
        %v210 = vld [vmem:[%s209] sm:$0x7f]
        %s211 = sadd.s32 %s208, 1
        %s212 = scalar_lea.vmem %s174, %s211 [#allocation2]
        %v213 = vld [vmem:[%s212] sm:$0x7f]
        %215 = vrot.lane.b32.xlu0 %v213, 64
        %v216 = vpop.permute.xlu0 %215
        %vm218 = vcmask 523264
        %v219 = vsel %vm218, %v210, %v216
        %v220 = vld [vmem:[%s1] sm:$0xff]
        %v221 = vld [vmem:[%s1 + $0x8] sm:$0xff]
        %v222 = vld [vmem:[%s1 + $0x10] sm:$0xff]
        %v223 = vld [vmem:[%s1 + $0x18] sm:$0xff]
        %v224 = vld [vmem:[%s1 + $0x20] sm:$0xff]
        %v225 = vld [vmem:[%s1 + $0x28] sm:$0xff]
        %v226 = vld [vmem:[%s1 + $0x30] sm:$0xff]
        %v227 = vld [vmem:[%s1 + $0x38] sm:$0xff]
        %v228 = vld [vmem:[%s2] sm:$0xff]
        %v229 = vld [vmem:[%s2 + $0x8] sm:$0xff]
        %v230 = vld [vmem:[%s2 + $0x10] sm:$0xff]
        %v231 = vld [vmem:[%s2 + $0x18] sm:$0xff]
        %v232 = vld [vmem:[%s2 + $0x20] sm:$0xff]
        %v233 = vld [vmem:[%s2 + $0x28] sm:$0xff]
        %v234 = vld [vmem:[%s2 + $0x30] sm:$0xff]
        %v235 = vld [vmem:[%s2 + $0x38] sm:$0xff]
        %237 = vset.pattern.permute.xlu0 0
        %238 = vperm.xlu0 %237, %v228
        %v239 = vpop.permute.xlu0 %238
        %242 = vset.pattern.permute.xlu0 0
        %243 = vperm.xlu0 %242, %v229
        %v244 = vpop.permute.xlu0 %243
        %247 = vset.pattern.permute.xlu0 0
        %248 = vperm.xlu0 %247, %v230
        %v249 = vpop.permute.xlu0 %248
        %252 = vset.pattern.permute.xlu0 0
        %253 = vperm.xlu0 %252, %v231
        %v254 = vpop.permute.xlu0 %253
        %257 = vset.pattern.permute.xlu0 0
        %258 = vperm.xlu0 %257, %v232
        %v259 = vpop.permute.xlu0 %258
        %262 = vset.pattern.permute.xlu0 0
        %263 = vperm.xlu0 %262, %v233
        %v264 = vpop.permute.xlu0 %263
        %267 = vset.pattern.permute.xlu0 0
        %268 = vperm.xlu0 %267, %v234
        %v269 = vpop.permute.xlu0 %268
        %272 = vset.pattern.permute.xlu0 0
        %273 = vperm.xlu0 %272, %v235
        %v274 = vpop.permute.xlu0 %273
        %276 = vmatprep.subr.mxu0 0.0
        %277 = vmatpush1.xpose.msra.mxu0 %v219
        %278 = vmatprep.subr.mxu0 0.0
        %279 = vmatpush1.xpose.msra.mxu0 0.0
        %280 = vmatprep.subr.mxu0 0.0
        %281 = vmatpush1.xpose.msra.mxu0 0.0
        %282 = vmatprep.subr.mxu0 0.0
        %283 = vmatpush1.xpose.msra.mxu0 0.0
        %284 = vmatprep.subr.mxu0 0.0
        %285 = vmatpush1.xpose.msra.mxu0 0.0
        %286 = vmatprep.subr.mxu0 0.0
        %287 = vmatpush1.xpose.msra.mxu0 0.0
        %288 = vmatprep.subr.mxu0 0.0
        %289 = vmatpush1.xpose.msra.mxu0 0.0
        %290 = vmatprep.subr.mxu0 0.0
        %291 = vmatpush1.xpose.msra.mxu0 0.0
        %292 = vmatprep.subr.mxu0 0.0
        %293 = vmatpush1.xpose.msra.mxu0 0.0
        %294 = vmatprep.subr.mxu0 0.0
        %295 = vmatpush1.xpose.msra.mxu0 0.0
        %296 = vmatprep.subr.mxu0 0.0
        %297 = vmatpush1.xpose.msra.mxu0 0.0
        %298 = vmatprep.subr.mxu0 0.0
        %299 = vmatpush1.xpose.msra.mxu0 0.0
        %300 = vmatprep.subr.mxu0 0.0
        %301 = vmatpush1.xpose.msra.mxu0 0.0
        %302 = vmatprep.subr.mxu0 0.0
        %303 = vmatpush1.xpose.msra.mxu0 0.0
        %304 = vmatprep.subr.mxu0 0.0
        %305 = vmatpush1.xpose.msra.mxu0 0.0
        %306 = vmatprep.subr.mxu0 0.0
        %307 = vmatpush1.xpose.msra.mxu0 0.0
        %308 = vmatprep.subr.mxu0 0.0
        %309 = vmatpush1.xpose.msra.mxu0 0.0
        %310 = vmatprep.subr.mxu0 0.0
        %311 = vmatpush1.xpose.msra.mxu0 0.0
        %312 = vmatprep.subr.mxu0 0.0
        %313 = vmatpush1.xpose.msra.mxu0 0.0
        %314 = vmatprep.subr.mxu0 0.0
        %315 = vmatpush1.xpose.msra.mxu0 0.0
        %316 = vmatprep.subr.mxu0 0.0
        %317 = vmatpush1.xpose.msra.mxu0 0.0
        %318 = vmatprep.subr.mxu0 0.0
        %319 = vmatpush1.xpose.msra.mxu0 0.0
        %320 = vmatprep.subr.mxu0 0.0
        %321 = vmatpush1.xpose.msra.mxu0 0.0
        %322 = vmatprep.subr.mxu0 0.0
        %323 = vmatpush1.xpose.msra.mxu0 0.0
        %324 = vmatprep.subr.mxu0 0.0
        %325 = vmatpush1.xpose.msra.mxu0 0.0
        %326 = vmatprep.subr.mxu0 0.0
        %327 = vmatpush1.xpose.msra.mxu0 0.0
        %328 = vmatprep.subr.mxu0 0.0
        %329 = vmatpush1.xpose.msra.mxu0 0.0
        %330 = vmatprep.subr.mxu0 0.0
        %331 = vmatpush1.xpose.msra.mxu0 0.0
        %332 = vmatprep.subr.mxu0 0.0
        %333 = vmatpush1.xpose.msra.mxu0 0.0
        %334 = vmatprep.subr.mxu0 0.0
        %335 = vmatpush1.xpose.msra.mxu0 0.0
        %336 = vmatprep.subr.mxu0 0.0
        %337 = vmatpush1.xpose.msra.mxu0 0.0
        %338 = vmatprep.subr.mxu0 0.0
        %339 = vmatpush1.xpose.msra.mxu0 0.0
        %340 = vmatprep.mubr.f32.mxu0 0.0
        %341 = vmatmul.mubr.f32.gmra.mrb[0].mxu0 %v220
        %v342 = vpop.f32.mrb[0].mxu0
        %v343 = vadd.f32 %v239, %v342
        %v344 = vpop.f32.mrb[0].mxu0
        %345 = vmatprep.mubr.f32.mxu0 0.0
        %346 = vmatmul.mubr.f32.gmra.mrb[0].mxu0 %v221
        %v347 = vpop.f32.mrb[0].mxu0
        %v348 = vadd.f32 %v244, %v347
        %v349 = vpop.f32.mrb[0].mxu0
        %350 = vmatprep.mubr.f32.mxu0 0.0
        %351 = vmatmul.mubr.f32.gmra.mrb[0].mxu0 %v222
        %v352 = vpop.f32.mrb[0].mxu0
        %v353 = vadd.f32 %v249, %v352
        %v354 = vpop.f32.mrb[0].mxu0
        %355 = vmatprep.mubr.f32.mxu0 0.0
        %356 = vmatmul.mubr.f32.gmra.mrb[0].mxu0 %v223
        %v357 = vpop.f32.mrb[0].mxu0
        %v358 = vadd.f32 %v254, %v357
        %v359 = vpop.f32.mrb[0].mxu0
        %360 = vmatprep.mubr.f32.mxu0 0.0
        %361 = vmatmul.mubr.f32.gmra.mrb[0].mxu0 %v224
        %v362 = vpop.f32.mrb[0].mxu0
        %v363 = vadd.f32 %v259, %v362
        %v364 = vpop.f32.mrb[0].mxu0
        %365 = vmatprep.mubr.f32.mxu0 0.0
        %366 = vmatmul.mubr.f32.gmra.mrb[0].mxu0 %v225
        %v367 = vpop.f32.mrb[0].mxu0
        %v368 = vadd.f32 %v264, %v367
        %v369 = vpop.f32.mrb[0].mxu0
        %370 = vmatprep.mubr.f32.mxu0 0.0
        %371 = vmatmul.mubr.f32.gmra.mrb[0].mxu0 %v226
        %v372 = vpop.f32.mrb[0].mxu0
        %v373 = vadd.f32 %v269, %v372
        %v374 = vpop.f32.mrb[0].mxu0
        %375 = vmatprep.mubr.f32.mxu0 0.0
        %376 = vmatmul.mubr.f32.gmra.mrb[0].mxu0 %v227
        %v377 = vpop.f32.mrb[0].mxu0
        %v378 = vadd.f32 %v274, %v377
        %v379 = vpop.f32.mrb[0].mxu0
        %380 = vdwg.mxu0
        %v381 = vmax.f32 %v343, 0.0
        %v382 = vmax.f32 %v348, 0.0
        %v383 = vmax.f32 %v353, 0.0
        %v384 = vmax.f32 %v358, 0.0
        %v385 = vmax.f32 %v363, 0.0
        %v386 = vmax.f32 %v368, 0.0
        %v387 = vmax.f32 %v373, 0.0
        %v388 = vmax.f32 %v378, 0.0
        %vm389 = vcmask 56320
        %390 = vst.msk [vmem:[%s207] sm:$0xff] %vm389, %v381
        %391 = vst.msk [vmem:[%s207 + $0x8] sm:$0xff] %vm389, %v382
        %392 = vst.msk [vmem:[%s207 + $0x10] sm:$0xff] %vm389, %v383
        %393 = vst.msk [vmem:[%s207 + $0x18] sm:$0xff] %vm389, %v384
        %394 = vst.msk [vmem:[%s207 + $0x20] sm:$0xff] %vm389, %v385
        %395 = vst.msk [vmem:[%s207 + $0x28] sm:$0xff] %vm389, %v386
        %396 = vst.msk [vmem:[%s207 + $0x30] sm:$0xff] %vm389, %v387
        %397 = vst.msk [vmem:[%s207 + $0x38] sm:$0xff] %vm389, %v388
        %p398 = scmp.lt.s32.totalorder %s21, 1
        %s399 = scalar_select %p398, %s21, 1
        %p400 = scmp.lt.s32.totalorder %s22, 0
        %s401 = scalar_select %p400, %s22, 0
        %s402 = smul.addr %s399, 8
        %s403 = sadd.s32 %s401, %s402
        %s404 = smul.addr %s403, 8
        %s405 = scalar_lea.vmem %s3, %s404
        // Predicated region
        $region37: #{tpu_custom_call.1} parent=31 // pred_check
          %p406 = pneg %p117
        $region38: #{tpu_custom_call.1} parent=31 // pred_check_branch
          %408 = sbr.rel (%p406) target = $region40
        $region39: #{tpu_custom_call.1} parent=31 // pred_region
          _
        $region40: #{tpu_custom_call.1} parent=31 // pred_fallthru
          _
      $region32: #{tpu_custom_call.1} parent=5 // pred_fallthru
        _
      %p409 = scmp.le.s32.totalorder 2, %s12
      // Predicated region
      $region41: #{tpu_custom_call.1} parent=5 // pred_check
        %p410 = pneg %p409
      $region42: #{tpu_custom_call.1} parent=5 // pred_check_branch
        %412 = sbr.rel (%p410) target = $region44
      $region43: #{tpu_custom_call.1} parent=5 // pred_region
        %s413 = ssub.s32 %s12, 2
        // Predicated region
        $region45: #{tpu_custom_call.1} parent=43 // pred_check
          %p414 = pneg %p123
        $region46: #{tpu_custom_call.1} parent=43 // pred_check_branch
          %416 = sbr.rel (%p414) target = $region48
        $region47: #{tpu_custom_call.1} parent=43 // pred_region
          %p417 = scmp.lt.s32.totalorder %s23, 1
          %s418 = scalar_select %p417, %s23, 1
          %p419 = scmp.lt.s32.totalorder %s24, 0
          %s420 = scalar_select %p419, %s24, 0
          %s421 = smul.addr %s418, 8
          %s422 = sadd.s32 %s420, %s421
          %s423 = smul.addr %s422, 8
          %s424 = scalar_lea.vmem %s3, %s423
        $region48: #{tpu_custom_call.1} parent=43 // pred_fallthru
          _
      $region44: #{tpu_custom_call.1} parent=5 // pred_fallthru
        _
    $region6: #{tpu_custom_call.1} parent=1 // loop_footer
      %s16 = sadd.s32 1, %s12
    $region7: #{tpu_custom_call.1} parent=1 // loop_footer_branch
      %11 = sbr.rel target = $region3
    $region8: #{tpu_custom_call.1} parent=1 // loop_exit
      _
    %425 = vsyncpa [#allocation3], 1
    %s426 = scalar_lea.sflag [#allocation3], 1
    %427 = vsyncpa %s426, 1

</llo_original>
